<compile_context>
chip_gen: v7x
topology: tpu7x:2x2x1
jax: 0.10.0
libtpu: 0.0.40
codegen_flags: <defaults>
</compile_context>

<pallas_src>
import functools
import math

import jax
import jax.numpy as jnp
from jax import lax
from jax.experimental import pallas as pl
from jax.experimental.pallas import tpu as pltpu

_LANES = 128
_MAX_BLOCK_ROWS = 4096       # 4096 x 128 f32 = 2 MiB per input block
_NUM_CHUNKS = 2              # leading "parallel" grid axis (per-core partials)


def _elementwise_loss_fn(model_dist, loss_dist, q):
    """Elementwise f(y, hx); only Python-float constants (no captured arrays)."""
    q = float(q)
    if model_dist == "gaussian":
        return lambda y, h: (y - h) * (y - h)
    if model_dist == "binomial":
        if loss_dist == "binomial":
            # numerically stable softplus == log1p(exp(h)) in non-overflow range
            def f(y, h):
                sp = jnp.maximum(h, 0.0) + jnp.log1p(jnp.exp(-jnp.abs(h)))
                return -y * h + sp
            return f
        if loss_dist == "gaussian":
            def f(y, h):
                d = y - 1.0 / (1.0 + jnp.exp(-h))
                return d * d
            return f
        # TODO(synk): ms_ssim branch (MS-SSIM multi-scale conv pyramid + L1 mix) not implemented.
        raise NotImplementedError("ms_ssim loss branch not implemented")
    if model_dist == "poisson":
        if loss_dist == "poisson":
            return lambda y, h: -y * h + jnp.exp(h)
        if loss_dist == "gaussian":
            def f(y, h):
                d = y - q * jnp.exp(h)
                return d * d
            return f
        # TODO(synk): ms_ssim branch (MS-SSIM multi-scale conv pyramid + L1 mix) not implemented.
        raise NotImplementedError("ms_ssim loss branch not implemented")
    raise ValueError(f"unknown model_dist {model_dist!r}")


def _dea_loss_kernel(y_ref, h_ref, o_ref, acc_ref, *, elem_fn, total,
                     block_elems, steps_per_chunk, needs_mask):
    p = pl.program_id(0)        # "parallel" chunk
    s = pl.program_id(1)        # "arbitrary" reduction step within the chunk

    @pl.when(s == 0)
    def _init():
        acc_ref[...] = jnp.zeros_like(acc_ref)

    # Upcast in-kernel so sub-32-bit inputs stream at native width over HBM.
    y = y_ref[...].astype(jnp.float32)
    h = h_ref[...].astype(jnp.float32)
    val = elem_fn(y, h)                              # (block_rows, 128) f32

    if needs_mask:
        # Only the final (ragged / overhang) blocks pay the masking cost;
        # interior blocks take the cheap unmasked accumulate path.
        # (int32 index math: assumes < 2**31 total elements.)
        blk = p * steps_per_chunk + s
        is_tail = (blk + 1) * block_elems > total

        @pl.when(jnp.logical_not(is_tail))
        def _interior():
            acc_ref[...] += val

        @pl.when(is_tail)
        def _tail():
            r_idx = lax.broadcasted_iota(jnp.int32, val.shape, 0)
            l_idx = lax.broadcasted_iota(jnp.int32, val.shape, 1)
            flat = blk * block_elems + r_idx * _LANES + l_idx
            acc_ref[...] += jnp.where(flat < total, val, 0.0)
    else:
        acc_ref[...] += val                          # resident VMEM accumulator

    @pl.when(s == steps_per_chunk - 1)
    def _finalize():
        # Single sublane reduce per chunk; lane reduce happens in the wrapper.
        o_ref[...] = jnp.sum(acc_ref[...], axis=0)[None, None, :]


def dea_loss_2d(y, hx, model_dist="gaussian", loss_dist=None, q=1.0):
    """Pallas implementation of DEALoss2D(model_dist, loss_dist).forward(y, Hx, Q=q)."""
    assert y.shape == hx.shape
    elem_fn = _elementwise_loss_fn(model_dist, loss_dist, q)

    total = int(math.prod(y.shape))
    y_flat = jnp.reshape(y, (-1,))
    h_flat = jnp.reshape(hx, (-1,))

    # Pad only to a lane multiple (< 128 elements) and only when strictly
    # necessary; the common case (total % 128 == 0) is a copy-free reshape.
    lane_pad = (-total) % _LANES
    if lane_pad:
        y_flat = jnp.pad(y_flat, (0, lane_pad))
        h_flat = jnp.pad(h_flat, (0, lane_pad))
    rows = (total + lane_pad) // _LANES
    y2 = y_flat.reshape(rows, _LANES)
    h2 = h_flat.reshape(rows, _LANES)

    # Large lane-dense blocks: up to (4096, 128) f32 = 2 MiB per input block.
    # 2 inputs x 2 pipeline buffers + 2 MiB accumulator ~= 10 MiB VMEM; we
    # raise the scoped-VMEM limit to 32 MiB (valid on v5e/v6e/v7x).
    block_rows = rows if rows <= _MAX_BLOCK_ROWS else _MAX_BLOCK_ROWS
    block_elems = block_rows * _LANES
    num_blocks = pl.cdiv(rows, block_rows)
    num_chunks = _NUM_CHUNKS if num_blocks >= _NUM_CHUNKS else 1
    steps = pl.cdiv(num_blocks, num_chunks)
    needs_mask = (num_chunks * steps * block_elems) != total

    def in_map(p, s):
        # Clamp so overhang steps re-read a valid block (fully masked in-kernel).
        return (jnp.minimum(p * steps + s, num_blocks - 1), 0)

    kernel = functools.partial(
        _dea_loss_kernel, elem_fn=elem_fn, total=total,
        block_elems=block_elems, steps_per_chunk=steps, needs_mask=needs_mask)

    partials = pl.pallas_call(
        kernel,
        out_shape=jax.ShapeDtypeStruct((num_chunks, 1, _LANES), jnp.float32),
        grid_spec=pltpu.PrefetchScalarGridSpec(
            num_scalar_prefetch=0,
            grid=(num_chunks, steps),
            in_specs=[
                pl.BlockSpec((block_rows, _LANES), in_map),
                pl.BlockSpec((block_rows, _LANES), in_map),
            ],
            out_specs=pl.BlockSpec((1, 1, _LANES), lambda p, s: (p, 0, 0)),
            scratch_shapes=[pltpu.VMEM((block_rows, _LANES), jnp.float32)],
        ),
        compiler_params=pltpu.CompilerParams(
            dimension_semantics=("parallel", "arbitrary"),
            vmem_limit_bytes=32 * 1024 * 1024),
    )(y2, h2)

    return jnp.sum(partials) * (1.0 / float(total))


def _reference(y, hx, model_dist, loss_dist, q=1.0):
    """Pure-JAX replica of the torch forward for verification."""
    y = y.astype(jnp.float32)
    hx = hx.astype(jnp.float32)
    if model_dist == "gaussian":
        loss = (y - hx) ** 2
    elif model_dist == "binomial":
        if loss_dist == "binomial":
            loss = (-jnp.mean(y * hx, axis=(-1, -2))
                    + jnp.mean(jnp.log1p(jnp.exp(hx)), axis=(-1, -2)))
        elif loss_dist == "gaussian":
            loss = (y - jax.nn.sigmoid(hx)) ** 2
    elif model_dist == "poisson":
        if loss_dist == "poisson":
            loss = (-jnp.mean(y * hx, axis=(-1, -2))
                    + jnp.mean(jnp.exp(hx), axis=(-1, -2)))
        elif loss_dist == "gaussian":
            loss = (y - q * jnp.exp(hx)) ** 2
    return jnp.mean(loss)


if __name__ == "__main__":
    key = jax.random.PRNGKey(0)
    ky, kh = jax.random.split(key)

    B, C, H, W = 2, 4, 16, 16          # NCHW, small deterministic shapes
    y = jax.random.uniform(ky, (B, C, H, W), dtype=jnp.float32)
    hx = 0.5 * jax.random.normal(kh, (B, C, H, W), dtype=jnp.float32)

    cases = [
        ("gaussian", None, 1.0),
        ("binomial", "binomial", 1.0),
        ("binomial", "gaussian", 1.0),
        ("poisson", "poisson", 1.0),
        ("poisson", "gaussian", 2.0),
    ]

    ok = True
    for model_dist, loss_dist, q in cases:
        got = jax.block_until_ready(dea_loss_2d(y, hx, model_dist, loss_dist, q))
        want = _reference(y, hx, model_dist, loss_dist, q)
        if not jnp.allclose(got, want, rtol=1e-4, atol=1e-5):
            ok = False
            print(f"MISMATCH {model_dist}/{loss_dist}: got={got} want={want}")

    # Extra shapes: ragged tail (needs in-kernel mask), multi-block/2-chunk,
    # and ragged multi-block with an overhang step on the second chunk.
    for shape in [(2, 3, 15, 17), (2, 4, 1024, 640), (3, 5, 333, 257)]:
        ky2, kh2 = jax.random.split(jax.random.PRNGKey(1))
        y2 = jax.random.uniform(ky2, shape, dtype=jnp.float32)
        h2 = 0.5 * jax.random.normal(kh2, shape, dtype=jnp.float32)
        got = jax.block_until_ready(dea_loss_2d(y2, h2, "gaussian", None, 1.0))
        want = _reference(y2, h2, "gaussian", None, 1.0)
        if not jnp.allclose(got, want, rtol=1e-4, atol=1e-5):
            ok = False
            print(f"MISMATCH gaussian {shape}: got={got} want={want}")

    if ok:
        print("KERNEL_OK")
</pallas_src>

<mosaic_0001>
module attributes {stable_mosaic.version = 11 : i64} {
  func.func @_dea_loss_kernel(%arg0: i32, %arg1: i32, %arg2: memref<16x128xf32, #tpu.memory_space<vmem>>, %arg3: memref<16x128xf32, #tpu.memory_space<vmem>>, %arg4: memref<1x1x128xf32, #tpu.memory_space<vmem>>, %arg5: memref<16x128xf32, #tpu.memory_space<vmem>>) attributes {dimension_semantics = [#tpu.dimension_semantics<parallel>, #tpu.dimension_semantics<arbitrary>], iteration_bounds = array<i64: 1, 1>, scalar_prefetch = 0 : i64, scratch_operands = 1 : i64, tpu.core_type = #tpu.core_type<tc>, window_params = [{transform_indices = @transform_0, window_bounds = array<i64: 16, 128>}, {transform_indices = @transform_1, window_bounds = array<i64: 16, 128>}, {transform_indices = @transform_2, window_bounds = array<i64: 1, 1, 128>}]} {
    %c0_i32 = arith.constant 0 : i32
    %0 = arith.cmpi eq, %arg1, %c0_i32 : i32
    %1 = arith.extui %0 : i1 to i32
    %c0_i32_0 = arith.constant 0 : i32
    %2 = arith.cmpi ne, %1, %c0_i32_0 : i32
    scf.if %2 {
      %cst = arith.constant 0.000000e+00 : f32
      %14 = vector.broadcast %cst : f32 to vector<16x128xf32>
      %c0_10 = arith.constant 0 : index
      %c0_11 = arith.constant 0 : index
      %15 = vector.load %arg5[%c0_10, %c0_11] : memref<16x128xf32, #tpu.memory_space<vmem>>, vector<16x128xf32>
      tpu.vector_store %arg5[%c0_10, %c0_11], %14 {strides = array<i32>} : memref<16x128xf32, #tpu.memory_space<vmem>>, vector<16x128xf32>,
    } else {
    }
    %c0 = arith.constant 0 : index
    %c0_1 = arith.constant 0 : index
    %3 = vector.load %arg2[%c0, %c0_1] : memref<16x128xf32, #tpu.memory_space<vmem>>, vector<16x128xf32>
    %c0_2 = arith.constant 0 : index
    %c0_3 = arith.constant 0 : index
    %4 = vector.load %arg3[%c0_2, %c0_3] : memref<16x128xf32, #tpu.memory_space<vmem>>, vector<16x128xf32>
    %5 = arith.subf %3, %4 : vector<16x128xf32>
    %6 = arith.subf %3, %4 : vector<16x128xf32>
    %7 = arith.mulf %5, %6 : vector<16x128xf32>
    %c0_4 = arith.constant 0 : index
    %c0_5 = arith.constant 0 : index
    %8 = vector.load %arg5[%c0_4, %c0_5] : memref<16x128xf32, #tpu.memory_space<vmem>>, vector<16x128xf32>
    %9 = arith.addf %8, %7 : vector<16x128xf32>
    %c0_6 = arith.constant 0 : index
    %c0_7 = arith.constant 0 : index
    %10 = vector.load %arg5[%c0_6, %c0_7] : memref<16x128xf32, #tpu.memory_space<vmem>>, vector<16x128xf32>
    tpu.vector_store %arg5[%c0_6, %c0_7], %9 {strides = array<i32>} : memref<16x128xf32, #tpu.memory_space<vmem>>, vector<16x128xf32>,
    %c0_i32_8 = arith.constant 0 : i32
    %11 = arith.cmpi eq, %arg1, %c0_i32_8 : i32
    %12 = arith.extui %11 : i1 to i32
    %c0_i32_9 = arith.constant 0 : i32
    %13 = arith.cmpi ne, %12, %c0_i32_9 : i32
    scf.if %13 {
      %c0_10 = arith.constant 0 : index
      %c0_11 = arith.constant 0 : index
      %14 = vector.load %arg5[%c0_10, %c0_11] : memref<16x128xf32, #tpu.memory_space<vmem>>, vector<16x128xf32>
      %cst = arith.constant dense<0.000000e+00> : vector<128xf32>
      %15 = vector.multi_reduction <add>, %14, %cst [0] : vector<16x128xf32> to vector<128xf32>
      %16 = vector.shape_cast %15 : vector<128xf32> to vector<1x1x128xf32>
      %c0_12 = arith.constant 0 : index
      %c0_13 = arith.constant 0 : index
      %c0_14 = arith.constant 0 : index
      %17 = vector.load %arg4[%c0_12, %c0_13, %c0_14] : memref<1x1x128xf32, #tpu.memory_space<vmem>>, vector<1x1x128xf32>
      tpu.vector_store %arg4[%c0_12, %c0_13, %c0_14], %16 {strides = array<i32>} : memref<1x1x128xf32, #tpu.memory_space<vmem>>, vector<1x1x128xf32>,
    } else {
    }
    return
  }
  func.func @transform_0(%arg0: i32, %arg1: i32) -> (i32, i32) {
    %c1_i32 = arith.constant 1 : i32
    %0 = arith.muli %arg0, %c1_i32 : i32
    %1 = arith.addi %0, %arg1 : i32
    %c0_i32 = arith.constant 0 : i32
    %2 = arith.minsi %1, %c0_i32 : i32
    %c0_i32_0 = arith.constant 0 : i32
    %c0_i32_1 = arith.constant 0 : i32
    return %2, %c0_i32_0 : i32, i32
  }
  func.func @transform_1(%arg0: i32, %arg1: i32) -> (i32, i32) {
    %c1_i32 = arith.constant 1 : i32
    %0 = arith.muli %arg0, %c1_i32 : i32
    %1 = arith.addi %0, %arg1 : i32
    %c0_i32 = arith.constant 0 : i32
    %2 = arith.minsi %1, %c0_i32 : i32
    %c0_i32_0 = arith.constant 0 : i32
    %c0_i32_1 = arith.constant 0 : i32
    return %2, %c0_i32_0 : i32, i32
  }
  func.func @transform_2(%arg0: i32, %arg1: i32) -> (i32, i32, i32) {
    %c0_i32 = arith.constant 0 : i32
    %c0_i32_0 = arith.constant 0 : i32
    %c0_i32_1 = arith.constant 0 : i32
    return %arg0, %c0_i32, %c0_i32_0 : i32, i32, i32
  }
}

</mosaic_0001>

<llo_original>
// kernel: tpu_custom_call.1
$region0: #{tpu_custom_call.1}
  #allocation0 [shape = 'u32[]', space=smem, size = 0x4, offset = 0x4, fixed_abs, tag = 'smem constant byte address 0x4 - core index']
  #allocation1 [shape = 'u32[144,128]{1,0:T(1,128)}', space=vmem, size = 0x12000, scoped, tag = 'internal scratch']
  #allocation2 [shape = 'f32[16,128]{1,0:T(8,128)}', space=vmem, size = 0x2000, scoped, tag = 'scratch operand']
  %s0 = inlined_call_operand.hbm [shape: f32[16,128], index: 0, kind: input, shape index: {}]
  %s1 = inlined_call_operand.hbm [shape: f32[16,128], index: 1, kind: input, shape index: {}]
  %s2 = inlined_call_operand.hbm [shape: f32[1,1,128], index: 2, kind: output, shape index: {}]
  %s3 = sld [smem:[#allocation0]]
  $region34: #{tpu_custom_call.1} parent=0
    _
  %s5 = ssub.s32 1, %s3
  %s6 = scalar_select 0, %s5, %s3
  $region1: #{tpu_custom_call.1} parent=0
    #allocation3 [shape = 'u8[8192]{0}', space=vmem, size = 0x2000, scoped, tag = 'input window, operand 0, single buffered']
    #allocation4 [shape = 's32[1]{0}', space=sflag, size = 0x4, scoped, tag = 'scoped memory for tpu_custom_call.1']
    #allocation5 [shape = 's32[1]{0}', space=sflag, size = 0x4, scoped, tag = 'scoped memory for tpu_custom_call.1']
    #allocation6 [shape = 'u8[8192]{0}', space=vmem, size = 0x2000, scoped, tag = 'input window, operand 1, single buffered']
    #allocation7 [shape = 's32[1]{0}', space=sflag, size = 0x4, scoped, tag = 'scoped memory for tpu_custom_call.1']
    #allocation8 [shape = 'u8[512]{0}', space=vmem, size = 0x400, scoped, tag = 'output window, operand 0, single buffered']
    %7 = vsyncpa [#allocation4], 0
    %8 = vsyncpa [#allocation7], 0
    %9 = vsyncpa [#allocation5], 0
    // Predicated region
    $region2: #{tpu_custom_call.1} parent=1 // pred_check
      _
    $region3: #{tpu_custom_call.1} parent=1 // pred_check_branch
      %11 = sbr.rel (0) target = $region5
    $region4: #{tpu_custom_call.1} parent=1 // pred_region
      %s12 = sadd.s32 0, 0
      %p13 = scmp.lt.s32.totalorder %s12, 0
      %s14 = scalar_select %p13, %s12, 0
      %s15 = smul.u32 2, %s14
      %s17 = ssub.s32 256, 256
      %18 = vsyncadd [#allocation4], %s17
      %s19 = smul.addr %s15, 128
      %s20 = scalar_lea.hbm %s0, %s19
      %s21 = sshll.u32 [#allocation3], 4
      %s22 = int_to_ptr.vmem [resolvable:$true] %s21
      %27 = dma.hbm_to_vmem [thread:$0]  %s20, 256, %s22, [#allocation4], 128, 128, 8
    $region5: #{tpu_custom_call.1} parent=1 // pred_fallthru
      _
    // Predicated region
    $region6: #{tpu_custom_call.1} parent=1 // pred_check
      _
    $region7: #{tpu_custom_call.1} parent=1 // pred_check_branch
      %29 = sbr.rel (0) target = $region9
    $region8: #{tpu_custom_call.1} parent=1 // pred_region
      %s30 = sadd.s32 0, 0
      %p31 = scmp.lt.s32.totalorder %s30, 0
      %s32 = scalar_select %p31, %s30, 0
      %s33 = smul.u32 2, %s32
      %s35 = ssub.s32 256, 256
      %36 = vsyncadd [#allocation7], %s35
      %s37 = smul.addr %s33, 128
      %s38 = scalar_lea.hbm %s1, %s37
      %s39 = sshll.u32 [#allocation6], 4
      %s40 = int_to_ptr.vmem [resolvable:$true] %s39
      %45 = dma.hbm_to_vmem [thread:$0]  %s38, 256, %s40, [#allocation7], 128, 128, 8
    $region9: #{tpu_custom_call.1} parent=1 // pred_fallthru
      _
    // Predicated region
    $region10: #{tpu_custom_call.1} parent=1 // pred_check
      _
    $region11: #{tpu_custom_call.1} parent=1 // pred_check_branch
      %47 = sbr.rel (0) target = $region13
    $region12: #{tpu_custom_call.1} parent=1 // pred_region
      %48 = dma.done [#allocation4], 256
    $region13: #{tpu_custom_call.1} parent=1 // pred_fallthru
      _
    // Predicated region
    $region14: #{tpu_custom_call.1} parent=1 // pred_check
      _
    $region15: #{tpu_custom_call.1} parent=1 // pred_check_branch
      %50 = sbr.rel (0) target = $region17
    $region16: #{tpu_custom_call.1} parent=1 // pred_region
      %51 = dma.done [#allocation7], 256
    $region17: #{tpu_custom_call.1} parent=1 // pred_fallthru
      _
    %s52 = sadd.s32 0, 0
    %p53 = scmp.lt.s32.totalorder %s52, 0
    %s54 = scalar_select %p53, %s52, 0
    %s55 = smul.u32 2, %s54
    %s56 = sadd.s32 0, 0
    %p57 = scmp.lt.s32.totalorder %s56, 0
    %s58 = scalar_select %p57, %s56, 0
    %s59 = smul.u32 2, %s58
    %p60 = scmp.eq.s32.totalorder 0, 0
    // Predicated region
    $region18: #{tpu_custom_call.1} parent=1 // pred_check
      %p61 = pneg %p60
    $region19: #{tpu_custom_call.1} parent=1 // pred_check_branch
      %63 = sbr.rel (%p61) target = $region21
    $region20: #{tpu_custom_call.1} parent=1 // pred_region
      %64 = vst [vmem:[#allocation2] sm:$0xff] 0.0
      %65 = vst [vmem:[#allocation2 + $0x8] sm:$0xff] 0.0
    $region21: #{tpu_custom_call.1} parent=1 // pred_fallthru
      _
    %v66 = vld [vmem:[#allocation3] sm:$0xff]
    %v67 = vld [vmem:[#allocation3 + $0x8] sm:$0xff]
    %v68 = vld [vmem:[#allocation6] sm:$0xff]
    %v69 = vld [vmem:[#allocation6 + $0x8] sm:$0xff]
    %v70 = vsub.f32 %v66, %v68
    %v71 = vsub.f32 %v67, %v69
    %v72 = vmul.f32 %v70, %v70
    %v73 = vmul.f32 %v71, %v71
    %v74 = vld [vmem:[#allocation2] sm:$0xff]
    %v75 = vld [vmem:[#allocation2 + $0x8] sm:$0xff]
    %v76 = vadd.f32 %v74, %v72
    %v77 = vadd.f32 %v75, %v73
    %78 = vst [vmem:[#allocation2] sm:$0xff] %v76
    %79 = vst [vmem:[#allocation2 + $0x8] sm:$0xff] %v77
    // Predicated region
    $region22: #{tpu_custom_call.1} parent=1 // pred_check
      %p80 = pneg %p60
    $region23: #{tpu_custom_call.1} parent=1 // pred_check_branch
      %82 = sbr.rel (%p80) target = $region25
    $region24: #{tpu_custom_call.1} parent=1 // pred_region
      %v83 = vld [vmem:[#allocation2] sm:$0xff]
      %v84 = vld [vmem:[#allocation2 + $0x8] sm:$0xff]
      %v85 = vadd.f32 %v83, %v84
      %v86 = vrot.slane %v85, 4
      %v87 = vadd.f32 %v85, %v86
      %v88 = vrot.slane %v87, 2
      %v89 = vadd.f32 %v87, %v88
      %v90 = vrot.slane %v89, 1
      %v91 = vadd.f32 %v89, %v90
      %92 = vst [vmem:[#allocation8] sm:$0x1] %v91
    $region25: #{tpu_custom_call.1} parent=1 // pred_fallthru
      _
    // Predicated region
    $region26: #{tpu_custom_call.1} parent=1 // pred_check
      _
    $region27: #{tpu_custom_call.1} parent=1 // pred_check_branch
      %94 = sbr.rel (0) target = $region29
    $region28: #{tpu_custom_call.1} parent=1 // pred_region
      %s96 = ssub.s32 16, 16
      %97 = vsyncadd [#allocation5], %s96
      %s99 = sshll.u32 [#allocation8], 4
      %s100 = int_to_ptr.vmem [resolvable:$true] %s99
      %102 = dma.vmem_to_hbm [thread:$0]  %s100, 16, %s2, [#allocation5]
    $region29: #{tpu_custom_call.1} parent=1 // pred_fallthru
      _
    // Predicated region
    $region30: #{tpu_custom_call.1} parent=1 // pred_check
      _
    $region31: #{tpu_custom_call.1} parent=1 // pred_check_branch
      %104 = sbr.rel (0) target = $region33
    $region32: #{tpu_custom_call.1} parent=1 // pred_region
      %105 = dma.done [#allocation5], 16
    $region33: #{tpu_custom_call.1} parent=1 // pred_fallthru
      _
    %106 = vsyncpa [#allocation4], 1
    %107 = vsyncpa [#allocation7], 1
    %108 = vsyncpa [#allocation5], 1

</llo_original>
